<compile_context>
chip_gen: v6e
topology: v6e:2x2x1
jax: 0.10.0
libtpu: 0.0.40
codegen_flags: <defaults>
</compile_context>

<pallas_src>
import functools

import jax
import jax.numpy as jnp
from jax.experimental import pallas as pl
from jax.experimental.pallas import tpu as pltpu

SELU_ALPHA = 1.6732632423543772848170429916717
SELU_SCALE = 1.0507009873554804934193349852946


def _selu(x):
    # exp only sees non-positive values -> no inf in the discarded branch.
    neg = SELU_ALPHA * (jnp.exp(jnp.minimum(x, 0.0)) - 1.0)
    return SELU_SCALE * jnp.where(x > 0, x, neg)


def _round_up(n, m):
    return ((n + m - 1) // m) * m


def generator_kernel(x_ref,
                     w1_ref, b1_ref,
                     w2_ref, b2_ref,
                     w3_ref, b3_ref,
                     w4_ref, b4_ref,
                     o_ref):
    # Hot path: 4 MXU matmuls + SELU (exp on EUP, where/mul on VPU), fused in
    # VMEM.  Weights are grid-resident; only x / out tiles stream per step.
    x = x_ref[...]

    h = jnp.dot(x, w1_ref[...], preferred_element_type=jnp.float32) + b1_ref[...]
    h = _selu(h)

    h = jnp.dot(h, w2_ref[...], preferred_element_type=jnp.float32) + b2_ref[...]
    h = _selu(h)

    h = jnp.dot(h, w3_ref[...], preferred_element_type=jnp.float32) + b3_ref[...]
    h = _selu(h)

    out = jnp.dot(h, w4_ref[...], preferred_element_type=jnp.float32) + b4_ref[...]
    o_ref[...] = out.astype(o_ref.dtype)  # [tile_b, out_dim] store (out_dim=17)


def _choose_tiling(B, max_tile_b):
    """Balanced batch tiling that minimizes padding waste.

    - num_tiles = cdiv(B, max_tile_b), but at least 2 steps once B > 256 so
      both v7x TensorCores get work (costs one extra ~0.35 us step on
      single-TC v5e/v6e -- negligible).
    - tile_b rounded up to a multiple of 8 (sublane alignment).
    """
    num_tiles = pl.cdiv(B, max_tile_b)
    if B > 256:
        num_tiles = max(num_tiles, 2)
    tile_b = _round_up(pl.cdiv(B, num_tiles), 8)
    b_pad = num_tiles * tile_b
    return tile_b, b_pad, num_tiles


@functools.partial(jax.jit, static_argnames=("max_tile_b",))
def generator_forward(x, params, *, max_tile_b=1024):
    """x: [B, input_size] float32; params: dict of weights [in,out] / biases [1,out]."""
    B, in_dim = x.shape
    out_dim = params["w4"].shape[1]

    tile_b, b_pad, num_tiles = _choose_tiling(B, max_tile_b)
    xp = jnp.pad(x, ((0, b_pad - B), (0, 0))) if b_pad != B else x

    grid = (num_tiles,)

    # Weights/biases: full-array blocks, same block every grid step -> resident.
    resident = lambda a: pl.BlockSpec(a.shape, lambda i: (0,) * a.ndim)

    out = pl.pallas_call(
        generator_kernel,
        out_shape=jax.ShapeDtypeStruct((b_pad, out_dim), jnp.float32),
        grid=grid,
        in_specs=[
            pl.BlockSpec((tile_b, in_dim), lambda i: (i, 0)),
            resident(params["w1"]), resident(params["b1"]),
            resident(params["w2"]), resident(params["b2"]),
            resident(params["w3"]), resident(params["b3"]),
            resident(params["w4"]), resident(params["b4"]),
        ],
        # Last block dim (out_dim=17) equals the full array dim -> legal,
        # and shrinks HBM writeback 7.5x vs the old 128-lane padded output.
        out_specs=pl.BlockSpec((tile_b, out_dim), lambda i: (i, 0)),
        compiler_params=pltpu.CompilerParams(
            # Batch steps are independent -> shard across both TCs on v7x.
            dimension_semantics=("parallel",),
        ),
    )(xp,
      params["w1"], params["b1"],
      params["w2"], params["b2"],
      params["w3"], params["b3"],
      params["w4"], params["b4"])

    return out[:B] if b_pad != B else out


def init_params(key, input_size, hidden_size):
    """Deterministic init mimicking PyTorch Linear's U(-1/sqrt(fan_in), +)."""
    H2 = hidden_size * 2
    dims = [(input_size, H2), (H2, H2), (H2, H2), (H2, input_size + 1)]
    params = {}
    keys = jax.random.split(key, 2 * len(dims))
    for i, (fan_in, fan_out) in enumerate(dims):
        bound = 1.0 / jnp.sqrt(fan_in)
        params[f"w{i+1}"] = jax.random.uniform(
            keys[2 * i], (fan_in, fan_out), jnp.float32, -bound, bound)
        # bias stored as [1, fan_out] so it broadcasts over the batch rows
        params[f"b{i+1}"] = jax.random.uniform(
            keys[2 * i + 1], (1, fan_out), jnp.float32, -bound, bound)
    return params


def generator_reference(x, params):
    """Pure-JAX reference for correctness check."""
    h = _selu(x @ params["w1"] + params["b1"])
    h = _selu(h @ params["w2"] + params["b2"])
    h = _selu(h @ params["w3"] + params["b3"])
    return h @ params["w4"] + params["b4"]


if __name__ == "__main__":
    input_size = 16
    hidden_size = 32

    key = jax.random.PRNGKey(0)
    k_params, k_x1, k_x2 = jax.random.split(key, 3)
    params = init_params(k_params, input_size, hidden_size)

    # Small batch (single grid step, no padding).
    x_small = jax.random.normal(k_x1, (8, input_size), jnp.float32)
    out_small = jax.block_until_ready(generator_forward(x_small, params))
    ref_small = generator_reference(x_small, params)
    assert out_small.shape == (8, input_size + 1), out_small.shape
    assert jnp.allclose(out_small, ref_small, atol=1e-4, rtol=1e-4), \
        float(jnp.max(jnp.abs(out_small - ref_small)))

    # Larger batch exercising the multi-step grid + minimal batch padding path
    # (B=600 -> 2 tiles of 304 rows, only 8 padded rows).
    x_big = jax.random.normal(k_x2, (600, input_size), jnp.float32)
    out_big = jax.block_until_ready(generator_forward(x_big, params))
    ref_big = generator_reference(x_big, params)
    assert out_big.shape == (600, input_size + 1), out_big.shape
    assert jnp.allclose(out_big, ref_big, atol=1e-4, rtol=1e-4), \
        float(jnp.max(jnp.abs(out_big - ref_big)))

    print("KERNEL_OK")
</pallas_src>

<mosaic_0001>
module attributes {stable_mosaic.version = 11 : i64} {
  func.func @generator_kernel(%arg0: i32, %arg1: memref<8x16xf32, #tpu.memory_space<vmem>>, %arg2: memref<16x64xf32, #tpu.memory_space<vmem>>, %arg3: memref<1x64xf32, #tpu.memory_space<vmem>>, %arg4: memref<64x64xf32, #tpu.memory_space<vmem>>, %arg5: memref<1x64xf32, #tpu.memory_space<vmem>>, %arg6: memref<64x64xf32, #tpu.memory_space<vmem>>, %arg7: memref<1x64xf32, #tpu.memory_space<vmem>>, %arg8: memref<64x17xf32, #tpu.memory_space<vmem>>, %arg9: memref<1x17xf32, #tpu.memory_space<vmem>>, %arg10: memref<8x17xf32, #tpu.memory_space<vmem>>) attributes {dimension_semantics = [#tpu.dimension_semantics<parallel>], iteration_bounds = array<i64: 1>, scalar_prefetch = 0 : i64, scratch_operands = 0 : i64, tpu.core_type = #tpu.core_type<tc>, window_params = [{transform_indices = @transform_0, window_bounds = array<i64: 8, 16>}, {pipeline_mode = #tpu.pipeline_mode<synchronous>, transform_indices = @transform_1, window_bounds = array<i64: 16, 64>}, {pipeline_mode = #tpu.pipeline_mode<synchronous>, transform_indices = @transform_2, window_bounds = array<i64: 1, 64>}, {pipeline_mode = #tpu.pipeline_mode<synchronous>, transform_indices = @transform_3, window_bounds = array<i64: 64, 64>}, {pipeline_mode = #tpu.pipeline_mode<synchronous>, transform_indices = @transform_4, window_bounds = array<i64: 1, 64>}, {pipeline_mode = #tpu.pipeline_mode<synchronous>, transform_indices = @transform_5, window_bounds = array<i64: 64, 64>}, {pipeline_mode = #tpu.pipeline_mode<synchronous>, transform_indices = @transform_6, window_bounds = array<i64: 1, 64>}, {pipeline_mode = #tpu.pipeline_mode<synchronous>, transform_indices = @transform_7, window_bounds = array<i64: 64, 17>}, {pipeline_mode = #tpu.pipeline_mode<synchronous>, transform_indices = @transform_8, window_bounds = array<i64: 1, 17>}, {transform_indices = @transform_9, window_bounds = array<i64: 8, 17>}]} {
    %c0 = arith.constant 0 : index
    %c0_0 = arith.constant 0 : index
    %0 = vector.load %arg1[%c0, %c0_0] : memref<8x16xf32, #tpu.memory_space<vmem>>, vector<8x16xf32>
    %c0_1 = arith.constant 0 : index
    %c0_2 = arith.constant 0 : index
    %1 = vector.load %arg2[%c0_1, %c0_2] : memref<16x64xf32, #tpu.memory_space<vmem>>, vector<16x64xf32>
    %cst = arith.constant dense<0.000000e+00> : vector<8x64xf32>
    %2 = tpu.matmul %0, %1, %cst {dimension_numbers = #tpu.dot_dimension_numbers<[1], [0], [0], [1], [0, 0, 1, 1], [], []>} : vector<8x16xf32>, vector<16x64xf32>, vector<8x64xf32> -> vector<8x64xf32>
    %c0_3 = arith.constant 0 : index
    %c0_4 = arith.constant 0 : index
    %3 = vector.load %arg3[%c0_3, %c0_4] : memref<1x64xf32, #tpu.memory_space<vmem>>, vector<1x64xf32>
    %4 = vector.broadcast %3 : vector<1x64xf32> to vector<8x64xf32>
    %5 = arith.addf %2, %4 : vector<8x64xf32>
    %cst_5 = arith.constant 0.000000e+00 : f32
    %6 = vector.broadcast %cst_5 : f32 to vector<8x64xf32>
    %7 = arith.minimumf %5, %6 : vector<8x64xf32>
    %8 = math.exp %7 : vector<8x64xf32>
    %cst_6 = arith.constant 1.000000e+00 : f32
    %9 = vector.broadcast %cst_6 : f32 to vector<8x64xf32>
    %10 = arith.subf %8, %9 : vector<8x64xf32>
    %cst_7 = arith.constant 1.67326319 : f32
    %11 = vector.broadcast %cst_7 : f32 to vector<8x64xf32>
    %12 = arith.mulf %11, %10 : vector<8x64xf32>
    %cst_8 = arith.constant 0.000000e+00 : f32
    %13 = vector.broadcast %cst_8 : f32 to vector<8x64xf32>
    %14 = arith.cmpf ogt, %5, %13 : vector<8x64xf32>
    %15 = arith.select %14, %5, %12 : vector<8x64xi1>, vector<8x64xf32>
    %cst_9 = arith.constant 1.05070102 : f32
    %16 = vector.broadcast %cst_9 : f32 to vector<8x64xf32>
    %17 = arith.mulf %16, %15 : vector<8x64xf32>
    %c0_10 = arith.constant 0 : index
    %c0_11 = arith.constant 0 : index
    %18 = vector.load %arg4[%c0_10, %c0_11] : memref<64x64xf32, #tpu.memory_space<vmem>>, vector<64x64xf32>
    %cst_12 = arith.constant dense<0.000000e+00> : vector<8x64xf32>
    %19 = tpu.matmul %17, %18, %cst_12 {dimension_numbers = #tpu.dot_dimension_numbers<[1], [0], [0], [1], [0, 0, 1, 1], [], []>} : vector<8x64xf32>, vector<64x64xf32>, vector<8x64xf32> -> vector<8x64xf32>
    %c0_13 = arith.constant 0 : index
    %c0_14 = arith.constant 0 : index
    %20 = vector.load %arg5[%c0_13, %c0_14] : memref<1x64xf32, #tpu.memory_space<vmem>>, vector<1x64xf32>
    %21 = vector.broadcast %20 : vector<1x64xf32> to vector<8x64xf32>
    %22 = arith.addf %19, %21 : vector<8x64xf32>
    %cst_15 = arith.constant 0.000000e+00 : f32
    %23 = vector.broadcast %cst_15 : f32 to vector<8x64xf32>
    %24 = arith.minimumf %22, %23 : vector<8x64xf32>
    %25 = math.exp %24 : vector<8x64xf32>
    %cst_16 = arith.constant 1.000000e+00 : f32
    %26 = vector.broadcast %cst_16 : f32 to vector<8x64xf32>
    %27 = arith.subf %25, %26 : vector<8x64xf32>
    %cst_17 = arith.constant 1.67326319 : f32
    %28 = vector.broadcast %cst_17 : f32 to vector<8x64xf32>
    %29 = arith.mulf %28, %27 : vector<8x64xf32>
    %cst_18 = arith.constant 0.000000e+00 : f32
    %30 = vector.broadcast %cst_18 : f32 to vector<8x64xf32>
    %31 = arith.cmpf ogt, %22, %30 : vector<8x64xf32>
    %32 = arith.select %31, %22, %29 : vector<8x64xi1>, vector<8x64xf32>
    %cst_19 = arith.constant 1.05070102 : f32
    %33 = vector.broadcast %cst_19 : f32 to vector<8x64xf32>
    %34 = arith.mulf %33, %32 : vector<8x64xf32>
    %c0_20 = arith.constant 0 : index
    %c0_21 = arith.constant 0 : index
    %35 = vector.load %arg6[%c0_20, %c0_21] : memref<64x64xf32, #tpu.memory_space<vmem>>, vector<64x64xf32>
    %cst_22 = arith.constant dense<0.000000e+00> : vector<8x64xf32>
    %36 = tpu.matmul %34, %35, %cst_22 {dimension_numbers = #tpu.dot_dimension_numbers<[1], [0], [0], [1], [0, 0, 1, 1], [], []>} : vector<8x64xf32>, vector<64x64xf32>, vector<8x64xf32> -> vector<8x64xf32>
    %c0_23 = arith.constant 0 : index
    %c0_24 = arith.constant 0 : index
    %37 = vector.load %arg7[%c0_23, %c0_24] : memref<1x64xf32, #tpu.memory_space<vmem>>, vector<1x64xf32>
    %38 = vector.broadcast %37 : vector<1x64xf32> to vector<8x64xf32>
    %39 = arith.addf %36, %38 : vector<8x64xf32>
    %cst_25 = arith.constant 0.000000e+00 : f32
    %40 = vector.broadcast %cst_25 : f32 to vector<8x64xf32>
    %41 = arith.minimumf %39, %40 : vector<8x64xf32>
    %42 = math.exp %41 : vector<8x64xf32>
    %cst_26 = arith.constant 1.000000e+00 : f32
    %43 = vector.broadcast %cst_26 : f32 to vector<8x64xf32>
    %44 = arith.subf %42, %43 : vector<8x64xf32>
    %cst_27 = arith.constant 1.67326319 : f32
    %45 = vector.broadcast %cst_27 : f32 to vector<8x64xf32>
    %46 = arith.mulf %45, %44 : vector<8x64xf32>
    %cst_28 = arith.constant 0.000000e+00 : f32
    %47 = vector.broadcast %cst_28 : f32 to vector<8x64xf32>
    %48 = arith.cmpf ogt, %39, %47 : vector<8x64xf32>
    %49 = arith.select %48, %39, %46 : vector<8x64xi1>, vector<8x64xf32>
    %cst_29 = arith.constant 1.05070102 : f32
    %50 = vector.broadcast %cst_29 : f32 to vector<8x64xf32>
    %51 = arith.mulf %50, %49 : vector<8x64xf32>
    %c0_30 = arith.constant 0 : index
    %c0_31 = arith.constant 0 : index
    %52 = vector.load %arg8[%c0_30, %c0_31] : memref<64x17xf32, #tpu.memory_space<vmem>>, vector<64x17xf32>
    %cst_32 = arith.constant dense<0.000000e+00> : vector<8x17xf32>
    %53 = tpu.matmul %51, %52, %cst_32 {dimension_numbers = #tpu.dot_dimension_numbers<[1], [0], [0], [1], [0, 0, 1, 1], [], []>} : vector<8x64xf32>, vector<64x17xf32>, vector<8x17xf32> -> vector<8x17xf32>
    %c0_33 = arith.constant 0 : index
    %c0_34 = arith.constant 0 : index
    %54 = vector.load %arg9[%c0_33, %c0_34] : memref<1x17xf32, #tpu.memory_space<vmem>>, vector<1x17xf32>
    %55 = vector.broadcast %54 : vector<1x17xf32> to vector<8x17xf32>
    %56 = arith.addf %53, %55 : vector<8x17xf32>
    %c0_35 = arith.constant 0 : index
    %c0_36 = arith.constant 0 : index
    %57 = vector.load %arg10[%c0_35, %c0_36] : memref<8x17xf32, #tpu.memory_space<vmem>>, vector<8x17xf32>
    tpu.vector_store %arg10[%c0_35, %c0_36], %56 {strides = array<i32>} : memref<8x17xf32, #tpu.memory_space<vmem>>, vector<8x17xf32>,
    return
  }
  func.func @transform_0(%arg0: i32) -> (i32, i32) {
    %c0_i32 = arith.constant 0 : i32
    %c0_i32_0 = arith.constant 0 : i32
    return %arg0, %c0_i32 : i32, i32
  }
  func.func @transform_1(%arg0: i32) -> (i32, i32) {
    %c0_i32 = arith.constant 0 : i32
    %c0_i32_0 = arith.constant 0 : i32
    %c0_i32_1 = arith.constant 0 : i32
    return %c0_i32, %c0_i32_0 : i32, i32
  }
  func.func @transform_2(%arg0: i32) -> (i32, i32) {
    %c0_i32 = arith.constant 0 : i32
    %c0_i32_0 = arith.constant 0 : i32
    %c0_i32_1 = arith.constant 0 : i32
    return %c0_i32, %c0_i32_0 : i32, i32
  }
  func.func @transform_3(%arg0: i32) -> (i32, i32) {
    %c0_i32 = arith.constant 0 : i32
    %c0_i32_0 = arith.constant 0 : i32
    %c0_i32_1 = arith.constant 0 : i32
    return %c0_i32, %c0_i32_0 : i32, i32
  }
  func.func @transform_4(%arg0: i32) -> (i32, i32) {
    %c0_i32 = arith.constant 0 : i32
    %c0_i32_0 = arith.constant 0 : i32
    %c0_i32_1 = arith.constant 0 : i32
    return %c0_i32, %c0_i32_0 : i32, i32
  }
  func.func @transform_5(%arg0: i32) -> (i32, i32) {
    %c0_i32 = arith.constant 0 : i32
    %c0_i32_0 = arith.constant 0 : i32
    %c0_i32_1 = arith.constant 0 : i32
    return %c0_i32, %c0_i32_0 : i32, i32
  }
  func.func @transform_6(%arg0: i32) -> (i32, i32) {
    %c0_i32 = arith.constant 0 : i32
    %c0_i32_0 = arith.constant 0 : i32
    %c0_i32_1 = arith.constant 0 : i32
    return %c0_i32, %c0_i32_0 : i32, i32
  }
  func.func @transform_7(%arg0: i32) -> (i32, i32) {
    %c0_i32 = arith.constant 0 : i32
    %c0_i32_0 = arith.constant 0 : i32
    %c0_i32_1 = arith.constant 0 : i32
    return %c0_i32, %c0_i32_0 : i32, i32
  }
  func.func @transform_8(%arg0: i32) -> (i32, i32) {
    %c0_i32 = arith.constant 0 : i32
    %c0_i32_0 = arith.constant 0 : i32
    %c0_i32_1 = arith.constant 0 : i32
    return %c0_i32, %c0_i32_0 : i32, i32
  }
  func.func @transform_9(%arg0: i32) -> (i32, i32) {
    %c0_i32 = arith.constant 0 : i32
    %c0_i32_0 = arith.constant 0 : i32
    return %arg0, %c0_i32 : i32, i32
  }
}

</mosaic_0001>

<llo_original>
// kernel: generator_forward.1
$region0: #{generator_forward.1}
  #allocation0 [shape = 'u32[]', space=smem, size = 0x4, offset = 0x4, fixed_abs, tag = 'smem constant byte address 0x4 - core index']
  #allocation1 [shape = 'u32[144,128]{1,0:T(1,128)}', space=vmem, size = 0x12000, scoped, tag = 'internal scratch']
  %s0 = inlined_call_operand.vmem [shape: f32[8,16], index: 0, kind: input, shape index: {}]
  %s1 = inlined_call_operand.vmem [shape: f32[16,64], index: 1, kind: input, shape index: {}]
  %s2 = inlined_call_operand.vmem [shape: f32[1,64], index: 2, kind: input, shape index: {}]
  %s3 = inlined_call_operand.vmem [shape: f32[64,64], index: 3, kind: input, shape index: {}]
  %s4 = inlined_call_operand.vmem [shape: f32[1,64], index: 4, kind: input, shape index: {}]
  %s5 = inlined_call_operand.hbm [shape: f32[64,64], index: 5, kind: input, shape index: {}]
  %s6 = inlined_call_operand.vmem [shape: f32[1,64], index: 6, kind: input, shape index: {}]
  %s7 = inlined_call_operand.vmem [shape: f32[64,17], index: 7, kind: input, shape index: {}]
  %s8 = inlined_call_operand.vmem [shape: f32[1,17], index: 8, kind: input, shape index: {}]
  %s9 = inlined_call_operand.hbm [shape: f32[8,17], index: 9, kind: output, shape index: {}]
  %s10 = sld [smem:[#allocation0]]
  $region50: #{generator_forward.1} parent=0
    _
  %s12 = ssub.s32 1, %s10
  %s13 = scalar_select 0, %s12, %s10
  $region1: #{generator_forward.1} parent=0
    #allocation2 [shape = 'u8[32768]{0}', space=vmem, size = 0x8000, scoped, tag = 'input window, operand 5, single buffered']
    #allocation3 [shape = 's32[1]{0}', space=sflag, size = 0x4, scoped, tag = 'scoped memory for generator_forward.1']
    #allocation4 [shape = 's32[1]{0}', space=sflag, size = 0x4, scoped, tag = 'scoped memory for generator_forward.1']
    #allocation5 [shape = 'u8[4096]{0}', space=vmem, size = 0x1000, scoped, tag = 'output window, operand 0, single buffered']
    %14 = vsyncpa [#allocation3], 0
    %15 = vsyncpa [#allocation4], 0
    // Predicated region
    $region2: #{generator_forward.1} parent=1 // pred_check
      _
    $region3: #{generator_forward.1} parent=1 // pred_check_branch
      %17 = sbr.rel (0) target = $region5
    $region4: #{generator_forward.1} parent=1 // pred_region
      _
    $region5: #{generator_forward.1} parent=1 // pred_fallthru
      _
    // Predicated region
    $region6: #{generator_forward.1} parent=1 // pred_check
      _
    $region7: #{generator_forward.1} parent=1 // pred_check_branch
      %19 = sbr.rel (0) target = $region9
    $region8: #{generator_forward.1} parent=1 // pred_region
      _
    $region9: #{generator_forward.1} parent=1 // pred_fallthru
      _
    // Predicated region
    $region10: #{generator_forward.1} parent=1 // pred_check
      _
    $region11: #{generator_forward.1} parent=1 // pred_check_branch
      %21 = sbr.rel (0) target = $region13
    $region12: #{generator_forward.1} parent=1 // pred_region
      _
    $region13: #{generator_forward.1} parent=1 // pred_fallthru
      _
    // Predicated region
    $region14: #{generator_forward.1} parent=1 // pred_check
      _
    $region15: #{generator_forward.1} parent=1 // pred_check_branch
      %23 = sbr.rel (0) target = $region17
    $region16: #{generator_forward.1} parent=1 // pred_region
      _
    $region17: #{generator_forward.1} parent=1 // pred_fallthru
      _
    // Predicated region
    $region18: #{generator_forward.1} parent=1 // pred_check
      _
    $region19: #{generator_forward.1} parent=1 // pred_check_branch
      %25 = sbr.rel (0) target = $region21
    $region20: #{generator_forward.1} parent=1 // pred_region
      _
    $region21: #{generator_forward.1} parent=1 // pred_fallthru
      _
    // Predicated region
    $region22: #{generator_forward.1} parent=1 // pred_check
      _
    $region23: #{generator_forward.1} parent=1 // pred_check_branch
      %27 = sbr.rel (0) target = $region25
    $region24: #{generator_forward.1} parent=1 // pred_region
      %s29 = ssub.s32 1024, 1024
      %30 = vsyncadd [#allocation3], %s29
      %s31 = sshll.u32 [#allocation2], 4
      %s32 = int_to_ptr.vmem [resolvable:$true] %s31
      %37 = dma.hbm_to_vmem [thread:$0]  %s5, 1024, %s32, [#allocation3], 128, 128, 8
    $region25: #{generator_forward.1} parent=1 // pred_fallthru
      _
    // Predicated region
    $region26: #{generator_forward.1} parent=1 // pred_check
      _
    $region27: #{generator_forward.1} parent=1 // pred_check_branch
      %39 = sbr.rel (0) target = $region29
    $region28: #{generator_forward.1} parent=1 // pred_region
      _
    $region29: #{generator_forward.1} parent=1 // pred_fallthru
      _
    // Predicated region
    $region30: #{generator_forward.1} parent=1 // pred_check
      _
    $region31: #{generator_forward.1} parent=1 // pred_check_branch
      %41 = sbr.rel (0) target = $region33
    $region32: #{generator_forward.1} parent=1 // pred_region
      _
    $region33: #{generator_forward.1} parent=1 // pred_fallthru
      _
    // Predicated region
    $region34: #{generator_forward.1} parent=1 // pred_check
      _
    $region35: #{generator_forward.1} parent=1 // pred_check_branch
      %43 = sbr.rel (0) target = $region37
    $region36: #{generator_forward.1} parent=1 // pred_region
      _
    $region37: #{generator_forward.1} parent=1 // pred_fallthru
      _
    // Predicated region
    $region38: #{generator_forward.1} parent=1 // pred_check
      _
    $region39: #{generator_forward.1} parent=1 // pred_check_branch
      %45 = sbr.rel (0) target = $region41
    $region40: #{generator_forward.1} parent=1 // pred_region
      %46 = dma.done [#allocation3], 1024
    $region41: #{generator_forward.1} parent=1 // pred_fallthru
      _
    %v47 = vld [vmem:[%s0] sm:$0xff]
    %v48 = vld [vmem:[%s1] sm:$0xff]
    %v49 = vld [vmem:[%s1 + $0x8] sm:$0xff]
    %v50 = vld [vmem:[%s2] sm:$0x1]
    %v52 = vlaneseq
    %v53 = vshrl.u32 %v52, 7
    %v54 = vsub.s32 0, %v53
    %v55 = vrot.slane %v50, %v54
    %vm57 = vcmask 130048
    %v59 = vsel %vm57, %v47, 0
    %61 = vmatprep.subr.mxu0 0.0
    %62 = vmatpush1.msra.mxu0 0.0
    %63 = vmatprep.subr.mxu0 0.0
    %64 = vmatpush1.msra.mxu0 0.0
    %65 = vmatprep.subr.mxu0 0.0
    %66 = vmatpush1.msra.mxu0 0.0
    %67 = vmatprep.subr.mxu0 0.0
    %68 = vmatpush1.msra.mxu0 0.0
    %69 = vmatprep.subr.mxu0 0.0
    %70 = vmatpush1.msra.mxu0 0.0
    %71 = vmatprep.subr.mxu0 0.0
    %72 = vmatpush1.msra.mxu0 0.0
    %73 = vmatprep.subr.mxu0 0.0
    %74 = vmatpush1.msra.mxu0 0.0
    %75 = vmatprep.subr.mxu0 0.0
    %76 = vmatpush1.msra.mxu0 0.0
    %77 = vmatprep.subr.mxu0 0.0
    %78 = vmatpush1.msra.mxu0 0.0
    %79 = vmatprep.subr.mxu0 0.0
    %80 = vmatpush1.msra.mxu0 0.0
    %81 = vmatprep.subr.mxu0 0.0
    %82 = vmatpush1.msra.mxu0 0.0
    %83 = vmatprep.subr.mxu0 0.0
    %84 = vmatpush1.msra.mxu0 0.0
    %85 = vmatprep.subr.mxu0 0.0
    %86 = vmatpush1.msra.mxu0 0.0
    %87 = vmatprep.subr.mxu0 0.0
    %88 = vmatpush1.msra.mxu0 0.0
    %89 = vmatprep.subr.mxu0 0.0
    %90 = vmatpush1.msra.mxu0 %v49
    %91 = vmatprep.subr.mxu0 0.0
    %92 = vmatpush1.msra.mxu0 %v48
    %93 = vmatprep.subr.mxu0 0.0
    %94 = vmatpush2.msra.mxu0 0.0
    %95 = vmatprep.subr.mxu0 0.0
    %96 = vmatpush2.msra.mxu0 0.0
    %97 = vmatprep.subr.mxu0 0.0
    %98 = vmatpush2.msra.mxu0 0.0
    %99 = vmatprep.subr.mxu0 0.0
    %100 = vmatpush2.msra.mxu0 0.0
    %101 = vmatprep.subr.mxu0 0.0
    %102 = vmatpush2.msra.mxu0 0.0
    %103 = vmatprep.subr.mxu0 0.0
    %104 = vmatpush2.msra.mxu0 0.0
    %105 = vmatprep.subr.mxu0 0.0
    %106 = vmatpush2.msra.mxu0 0.0
    %107 = vmatprep.subr.mxu0 0.0
    %108 = vmatpush2.msra.mxu0 0.0
    %109 = vmatprep.subr.mxu0 0.0
    %110 = vmatpush2.msra.mxu0 0.0
    %111 = vmatprep.subr.mxu0 0.0
    %112 = vmatpush2.msra.mxu0 0.0
    %113 = vmatprep.subr.mxu0 0.0
    %114 = vmatpush2.msra.mxu0 0.0
    %115 = vmatprep.subr.mxu0 0.0
    %116 = vmatpush2.msra.mxu0 0.0
    %117 = vmatprep.subr.mxu0 0.0
    %118 = vmatpush2.msra.mxu0 0.0
    %119 = vmatprep.subr.mxu0 0.0
    %120 = vmatpush2.msra.mxu0 0.0
    %121 = vmatprep.subr.mxu0 0.0
    %122 = vmatpush2.msra.mxu0 0.0
    %123 = vmatprep.subr.mxu0 0.0
    %124 = vmatpush2.msra.mxu0 0.0
    %125 = vmatprep.mubr.f32.mxu0 0.0
    %126 = vmatmul.mubr.f32.gmra.mxu0 %v59
    %v127 = vpop.f32.mrf.mxu0
    %v128 = vadd.f32 %v55, %v127
    %v129 = vpop.f32.mrf.mxu0
    %130 = vdwg.mxu0
    %v131 = vmin.f32 %v128, 0.0
    %v132 = vmul.f32 %v131, 1.442695
    %v133 = vpow.pop %v132
    %v134 = vsub.f32 %v133, 1.0
    %v135 = vmul.f32 %v134, 1.6732632
    %vm136 = vcmp.gt.f32.partialorder %v128, 0.0
    %v137 = vsel %vm136, %v128, %v135
    %v138 = vmul.f32 %v137, 1.050701
    %v139 = vld [vmem:[%s3] sm:$0xff]
    %v140 = vld [vmem:[%s3 + $0x8] sm:$0xff]
    %v141 = vld [vmem:[%s3 + $0x10] sm:$0xff]
    %v142 = vld [vmem:[%s3 + $0x18] sm:$0xff]
    %v143 = vld [vmem:[%s3 + $0x20] sm:$0xff]
    %v144 = vld [vmem:[%s3 + $0x28] sm:$0xff]
    %v145 = vld [vmem:[%s3 + $0x30] sm:$0xff]
    %v146 = vld [vmem:[%s3 + $0x38] sm:$0xff]
    %v147 = vld [vmem:[%s4] sm:$0x1]
    %v149 = vlaneseq
    %v150 = vshrl.u32 %v149, 7
    %v151 = vsub.s32 0, %v150
    %v152 = vrot.slane %v147, %v151
    %vm154 = vcmask 523264
    %v156 = vsel %vm154, %v138, 0
    %158 = vmatprep.subr.mxu0 0.0
    %159 = vmatpush1.msra.mxu0 0.0
    %160 = vmatprep.subr.mxu0 0.0
    %161 = vmatpush1.msra.mxu0 0.0
    %162 = vmatprep.subr.mxu0 0.0
    %163 = vmatpush1.msra.mxu0 0.0
    %164 = vmatprep.subr.mxu0 0.0
    %165 = vmatpush1.msra.mxu0 0.0
    %166 = vmatprep.subr.mxu0 0.0
    %167 = vmatpush1.msra.mxu0 0.0
    %168 = vmatprep.subr.mxu0 0.0
    %169 = vmatpush1.msra.mxu0 0.0
    %170 = vmatprep.subr.mxu0 0.0
    %171 = vmatpush1.msra.mxu0 0.0
    %172 = vmatprep.subr.mxu0 0.0
    %173 = vmatpush1.msra.mxu0 0.0
    %174 = vmatprep.subr.mxu0 0.0
    %175 = vmatpush1.msra.mxu0 %v146
    %176 = vmatprep.subr.mxu0 0.0
    %177 = vmatpush1.msra.mxu0 %v145
    %178 = vmatprep.subr.mxu0 0.0
    %179 = vmatpush1.msra.mxu0 %v144
    %180 = vmatprep.subr.mxu0 0.0
    %181 = vmatpush1.msra.mxu0 %v143
    %182 = vmatprep.subr.mxu0 0.0
    %183 = vmatpush1.msra.mxu0 %v142
    %184 = vmatprep.subr.mxu0 0.0
    %185 = vmatpush1.msra.mxu0 %v141
    %186 = vmatprep.subr.mxu0 0.0
    %187 = vmatpush1.msra.mxu0 %v140
    %188 = vmatprep.subr.mxu0 0.0
    %189 = vmatpush1.msra.mxu0 %v139
    %190 = vmatprep.subr.mxu0 0.0
    %191 = vmatpush2.msra.mxu0 0.0
    %192 = vmatprep.subr.mxu0 0.0
    %193 = vmatpush2.msra.mxu0 0.0
    %194 = vmatprep.subr.mxu0 0.0
    %195 = vmatpush2.msra.mxu0 0.0
    %196 = vmatprep.subr.mxu0 0.0
    %197 = vmatpush2.msra.mxu0 0.0
    %198 = vmatprep.subr.mxu0 0.0
    %199 = vmatpush2.msra.mxu0 0.0
    %200 = vmatprep.subr.mxu0 0.0
    %201 = vmatpush2.msra.mxu0 0.0
    %202 = vmatprep.subr.mxu0 0.0
    %203 = vmatpush2.msra.mxu0 0.0
    %204 = vmatprep.subr.mxu0 0.0
    %205 = vmatpush2.msra.mxu0 0.0
    %206 = vmatprep.subr.mxu0 0.0
    %207 = vmatpush2.msra.mxu0 0.0
    %208 = vmatprep.subr.mxu0 0.0
    %209 = vmatpush2.msra.mxu0 0.0
    %210 = vmatprep.subr.mxu0 0.0
    %211 = vmatpush2.msra.mxu0 0.0
    %212 = vmatprep.subr.mxu0 0.0
    %213 = vmatpush2.msra.mxu0 0.0
    %214 = vmatprep.subr.mxu0 0.0
    %215 = vmatpush2.msra.mxu0 0.0
    %216 = vmatprep.subr.mxu0 0.0
    %217 = vmatpush2.msra.mxu0 0.0
    %218 = vmatprep.subr.mxu0 0.0
    %219 = vmatpush2.msra.mxu0 0.0
    %220 = vmatprep.subr.mxu0 0.0
    %221 = vmatpush2.msra.mxu0 0.0
    %222 = vmatprep.mubr.f32.mxu0 0.0
    %223 = vmatmul.mubr.f32.gmra.mxu0 %v156
    %v224 = vpop.f32.mrf.mxu0
    %v225 = vadd.f32 %v152, %v224
    %v226 = vpop.f32.mrf.mxu0
    %227 = vdwg.mxu0
    %v228 = vmin.f32 %v225, 0.0
    %v229 = vmul.f32 %v228, 1.442695
    %v230 = vpow.pop %v229
    %v231 = vsub.f32 %v230, 1.0
    %v232 = vmul.f32 %v231, 1.6732632
    %vm233 = vcmp.gt.f32.partialorder %v225, 0.0
    %v234 = vsel %vm233, %v225, %v232
    %v235 = vmul.f32 %v234, 1.050701
    %v236 = vld [vmem:[#allocation2] sm:$0xff]
    %v237 = vld [vmem:[#allocation2 + $0x8] sm:$0xff]
    %v238 = vld [vmem:[#allocation2 + $0x10] sm:$0xff]
    %v239 = vld [vmem:[#allocation2 + $0x18] sm:$0xff]
    %v240 = vld [vmem:[#allocation2 + $0x20] sm:$0xff]
    %v241 = vld [vmem:[#allocation2 + $0x28] sm:$0xff]
    %v242 = vld [vmem:[#allocation2 + $0x30] sm:$0xff]
    %v243 = vld [vmem:[#allocation2 + $0x38] sm:$0xff]
    %v244 = vld [vmem:[%s6] sm:$0x1]
    %v246 = vlaneseq
    %v247 = vshrl.u32 %v246, 7
    %v248 = vsub.s32 0, %v247
    %v249 = vrot.slane %v244, %v248
    %v252 = vsel %vm154, %v235, 0
    %254 = vmatprep.subr.mxu0 0.0
    %255 = vmatpush1.msra.mxu0 0.0
    %256 = vmatprep.subr.mxu0 0.0
    %257 = vmatpush1.msra.mxu0 0.0
    %258 = vmatprep.subr.mxu0 0.0
    %259 = vmatpush1.msra.mxu0 0.0
    %260 = vmatprep.subr.mxu0 0.0
    %261 = vmatpush1.msra.mxu0 0.0
    %262 = vmatprep.subr.mxu0 0.0
    %263 = vmatpush1.msra.mxu0 0.0
    %264 = vmatprep.subr.mxu0 0.0
    %265 = vmatpush1.msra.mxu0 0.0
    %266 = vmatprep.subr.mxu0 0.0
    %267 = vmatpush1.msra.mxu0 0.0
    %268 = vmatprep.subr.mxu0 0.0
    %269 = vmatpush1.msra.mxu0 0.0
    %270 = vmatprep.subr.mxu0 0.0
    %271 = vmatpush1.msra.mxu0 %v243
    %272 = vmatprep.subr.mxu0 0.0
    %273 = vmatpush1.msra.mxu0 %v242
    %274 = vmatprep.subr.mxu0 0.0
    %275 = vmatpush1.msra.mxu0 %v241
    %276 = vmatprep.subr.mxu0 0.0
    %277 = vmatpush1.msra.mxu0 %v240
    %278 = vmatprep.subr.mxu0 0.0
    %279 = vmatpush1.msra.mxu0 %v239
    %280 = vmatprep.subr.mxu0 0.0
    %281 = vmatpush1.msra.mxu0 %v238
    %282 = vmatprep.subr.mxu0 0.0
    %283 = vmatpush1.msra.mxu0 %v237
    %284 = vmatprep.subr.mxu0 0.0
    %285 = vmatpush1.msra.mxu0 %v236
    %286 = vmatprep.subr.mxu0 0.0
    %287 = vmatpush2.msra.mxu0 0.0
    %288 = vmatprep.subr.mxu0 0.0
    %289 = vmatpush2.msra.mxu0 0.0
    %290 = vmatprep.subr.mxu0 0.0
    %291 = vmatpush2.msra.mxu0 0.0
    %292 = vmatprep.subr.mxu0 0.0
    %293 = vmatpush2.msra.mxu0 0.0
    %294 = vmatprep.subr.mxu0 0.0
    %295 = vmatpush2.msra.mxu0 0.0
    %296 = vmatprep.subr.mxu0 0.0
    %297 = vmatpush2.msra.mxu0 0.0
    %298 = vmatprep.subr.mxu0 0.0
    %299 = vmatpush2.msra.mxu0 0.0
    %300 = vmatprep.subr.mxu0 0.0
    %301 = vmatpush2.msra.mxu0 0.0
    %302 = vmatprep.subr.mxu0 0.0
    %303 = vmatpush2.msra.mxu0 0.0
    %304 = vmatprep.subr.mxu0 0.0
    %305 = vmatpush2.msra.mxu0 0.0
    %306 = vmatprep.subr.mxu0 0.0
    %307 = vmatpush2.msra.mxu0 0.0
    %308 = vmatprep.subr.mxu0 0.0
    %309 = vmatpush2.msra.mxu0 0.0
    %310 = vmatprep.subr.mxu0 0.0
    %311 = vmatpush2.msra.mxu0 0.0
    %312 = vmatprep.subr.mxu0 0.0
    %313 = vmatpush2.msra.mxu0 0.0
    %314 = vmatprep.subr.mxu0 0.0
    %315 = vmatpush2.msra.mxu0 0.0
    %316 = vmatprep.subr.mxu0 0.0
    %317 = vmatpush2.msra.mxu0 0.0
    %318 = vmatprep.mubr.f32.mxu0 0.0
    %319 = vmatmul.mubr.f32.gmra.mxu0 %v252
    %v320 = vpop.f32.mrf.mxu0
    %v321 = vadd.f32 %v249, %v320
    %v322 = vpop.f32.mrf.mxu0
    %323 = vdwg.mxu0
    %v324 = vmin.f32 %v321, 0.0
    %v325 = vmul.f32 %v324, 1.442695
    %v326 = vpow.pop %v325
    %v327 = vsub.f32 %v326, 1.0
    %v328 = vmul.f32 %v327, 1.6732632
    %vm329 = vcmp.gt.f32.partialorder %v321, 0.0
    %v330 = vsel %vm329, %v321, %v328
    %v331 = vmul.f32 %v330, 1.050701
    %v332 = vld [vmem:[%s7] sm:$0xff]
    %v333 = vld [vmem:[%s7 + $0x8] sm:$0xff]
    %v334 = vld [vmem:[%s7 + $0x10] sm:$0xff]
    %v335 = vld [vmem:[%s7 + $0x18] sm:$0xff]
    %v336 = vld [vmem:[%s7 + $0x20] sm:$0xff]
    %v337 = vld [vmem:[%s7 + $0x28] sm:$0xff]
    %v338 = vld [vmem:[%s7 + $0x30] sm:$0xff]
    %v339 = vld [vmem:[%s7 + $0x38] sm:$0xff]
    %v340 = vld [vmem:[%s8] sm:$0x1]
    %v342 = vlaneseq
    %v343 = vshrl.u32 %v342, 7
    %v344 = vsub.s32 0, %v343
    %v345 = vrot.slane %v340, %v344
    %v348 = vsel %vm154, %v331, 0
    %350 = vmatprep.subr.mxu0 0.0
    %351 = vmatpush1.msra.mxu0 0.0
    %352 = vmatprep.subr.mxu0 0.0
    %353 = vmatpush1.msra.mxu0 0.0
    %354 = vmatprep.subr.mxu0 0.0
    %355 = vmatpush1.msra.mxu0 0.0
    %356 = vmatprep.subr.mxu0 0.0
    %357 = vmatpush1.msra.mxu0 0.0
    %358 = vmatprep.subr.mxu0 0.0
    %359 = vmatpush1.msra.mxu0 0.0
    %360 = vmatprep.subr.mxu0 0.0
    %361 = vmatpush1.msra.mxu0 0.0
    %362 = vmatprep.subr.mxu0 0.0
    %363 = vmatpush1.msra.mxu0 0.0
    %364 = vmatprep.subr.mxu0 0.0
    %365 = vmatpush1.msra.mxu0 0.0
    %366 = vmatprep.subr.mxu0 0.0
    %367 = vmatpush1.msra.mxu0 %v339
    %368 = vmatprep.subr.mxu0 0.0
    %369 = vmatpush1.msra.mxu0 %v338
    %370 = vmatprep.subr.mxu0 0.0
    %371 = vmatpush1.msra.mxu0 %v337
    %372 = vmatprep.subr.mxu0 0.0
    %373 = vmatpush1.msra.mxu0 %v336
    %374 = vmatprep.subr.mxu0 0.0
    %375 = vmatpush1.msra.mxu0 %v335
    %376 = vmatprep.subr.mxu0 0.0
    %377 = vmatpush1.msra.mxu0 %v334
    %378 = vmatprep.subr.mxu0 0.0
    %379 = vmatpush1.msra.mxu0 %v333
    %380 = vmatprep.subr.mxu0 0.0
    %381 = vmatpush1.msra.mxu0 %v332
    %382 = vmatprep.subr.mxu0 0.0
    %383 = vmatpush2.msra.mxu0 0.0
    %384 = vmatprep.subr.mxu0 0.0
    %385 = vmatpush2.msra.mxu0 0.0
    %386 = vmatprep.subr.mxu0 0.0
    %387 = vmatpush2.msra.mxu0 0.0
    %388 = vmatprep.subr.mxu0 0.0
    %389 = vmatpush2.msra.mxu0 0.0
    %390 = vmatprep.subr.mxu0 0.0
    %391 = vmatpush2.msra.mxu0 0.0
    %392 = vmatprep.subr.mxu0 0.0
    %393 = vmatpush2.msra.mxu0 0.0
    %394 = vmatprep.subr.mxu0 0.0
    %395 = vmatpush2.msra.mxu0 0.0
    %396 = vmatprep.subr.mxu0 0.0
    %397 = vmatpush2.msra.mxu0 0.0
    %398 = vmatprep.subr.mxu0 0.0
    %399 = vmatpush2.msra.mxu0 0.0
    %400 = vmatprep.subr.mxu0 0.0
    %401 = vmatpush2.msra.mxu0 0.0
    %402 = vmatprep.subr.mxu0 0.0
    %403 = vmatpush2.msra.mxu0 0.0
    %404 = vmatprep.subr.mxu0 0.0
    %405 = vmatpush2.msra.mxu0 0.0
    %406 = vmatprep.subr.mxu0 0.0
    %407 = vmatpush2.msra.mxu0 0.0
    %408 = vmatprep.subr.mxu0 0.0
    %409 = vmatpush2.msra.mxu0 0.0
    %410 = vmatprep.subr.mxu0 0.0
    %411 = vmatpush2.msra.mxu0 0.0
    %412 = vmatprep.subr.mxu0 0.0
    %413 = vmatpush2.msra.mxu0 0.0
    %414 = vmatprep.mubr.f32.mxu0 0.0
    %415 = vmatmul.mubr.f32.gmra.mxu0 %v348
    %v416 = vpop.f32.mrf.mxu0
    %v417 = vadd.f32 %v345, %v416
    %v418 = vpop.f32.mrf.mxu0
    %419 = vdwg.mxu0
    %vm420 = vcmask 138240
    %421 = vst.msk [vmem:[#allocation5] sm:$0xff] %vm420, %v417
    // Predicated region
    $region42: #{generator_forward.1} parent=1 // pred_check
      _
    $region43: #{generator_forward.1} parent=1 // pred_check_branch
      %423 = sbr.rel (0) target = $region45
    $region44: #{generator_forward.1} parent=1 // pred_region
      %s425 = ssub.s32 128, 128
      %426 = vsyncadd [#allocation4], %s425
      %s428 = sshll.u32 [#allocation5], 4
      %s429 = int_to_ptr.vmem [resolvable:$true] %s428
      %431 = dma.vmem_to_hbm [thread:$0]  %s429, 128, %s9, [#allocation4]
    $region45: #{generator_forward.1} parent=1 // pred_fallthru
      _
    // Predicated region
    $region46: #{generator_forward.1} parent=1 // pred_check
      _
    $region47: #{generator_forward.1} parent=1 // pred_check_branch
      %433 = sbr.rel (0) target = $region49
    $region48: #{generator_forward.1} parent=1 // pred_region
      %434 = dma.done [#allocation4], 128
    $region49: #{generator_forward.1} parent=1 // pred_fallthru
      _
    %435 = vsyncpa [#allocation3], 1
    %436 = vsyncpa [#allocation4], 1

</llo_original>
